<compile_context>
chip_gen: v7x
topology: tpu7x:2x2x1
jax: 0.10.0
libtpu: 0.0.40
codegen_flags: <defaults>
</compile_context>

<pallas_src>
import functools

import jax
import jax.numpy as jnp
from jax.experimental import pallas as pl
from jax.experimental.pallas import tpu as pltpu


# --------------------------------------------------------------------------
# Kernels
# --------------------------------------------------------------------------
def _gca_fused_kernel(x_ref, wm_ref, w1t_ref, w2t_ref, o_ref):
    """One grid step = `bb` full images. Block last dims == full (C, HW)."""
    x = x_ref[...]                                           # (bb, C, HW)
    xf = x.astype(jnp.float32)
    bb, c, _ = xf.shape

    # --- spatial_pool: 1x1 conv C->1 (canonical (M=1,K=C)@(K=C,N=HW) on MXU,
    #     no relayout of the big x tile) -----------------------------------
    wm_b = jnp.broadcast_to(wm_ref[...][None], (bb, 1, c))   # (bb, 1, C)
    logits = jnp.einsum("boc,bch->boh", wm_b, xf,
                        preferred_element_type=jnp.float32)  # (bb, 1, HW)

    # Stabilized softmax numerator / denominator (normalization deferred).
    # Reductions over the logical lane extent are select-masked by Mosaic,
    # so no explicit lane mask is needed even when HW % 128 != 0.
    m = jnp.max(logits, axis=-1, keepdims=True)              # (bb, 1, 1)
    e = jnp.exp(logits - m)                                  # (bb, 1, HW)
    sum_e = jnp.sum(e, axis=-1, keepdims=True)               # (bb, 1, 1)

    # Softmax-weighted context: VPU multiply + masked lane reduction
    # (avoids a matmul contracting the unaligned lane axis).
    ctx_un = jnp.sum(xf * e, axis=-1)                        # (bb, C)
    ctx = ctx_un / sum_e[:, :, 0]                            # (bb, C)

    # --- channel_add_conv: two 1x1 convs on the 1x1 context ---------------
    h = jnp.dot(ctx, w1t_ref[...], preferred_element_type=jnp.float32)    # (bb, P)
    h = jnp.where(h > 0, h, 0.2 * h)                                      # LeakyReLU(0.2)
    add = jnp.dot(h, w2t_ref[...], preferred_element_type=jnp.float32)    # (bb, C)

    # --- residual add, broadcast over HW -----------------------------------
    o_ref[...] = (xf + add[:, :, None]).astype(o_ref.dtype)


def _gca_ctx_tiled_kernel(x_ref, wm_ref, w1t_ref, w2t_ref, add_ref,
                          m_sc, l_sc, ctx_sc, *, hw_total, hw_tile):
    """HW-tiled online-softmax reduction; writes `add` (B,1,C) at the last tile."""
    j = pl.program_id(1)

    @pl.when(j == 0)
    def _():
        m_sc[...] = jnp.full_like(m_sc, -1e30)
        l_sc[...] = jnp.zeros_like(l_sc)
        ctx_sc[...] = jnp.zeros_like(ctx_sc)

    x = x_ref[...].astype(jnp.float32)                       # (1, C, T)
    bb, c, _ = x.shape
    wm_b = jnp.broadcast_to(wm_ref[...][None], (bb, 1, c))   # (1, 1, C)
    logits = jnp.einsum("boc,bch->boh", wm_b, x,
                        preferred_element_type=jnp.float32)  # (1, 1, T)

    # Mask the ragged tail of the last HW tile (reads there are garbage).
    lane = jax.lax.broadcasted_iota(jnp.int32, logits.shape, 2) + j * hw_tile
    valid = lane < hw_total                                  # (1, 1, T)
    logits = jnp.where(valid, logits, -1e30)

    m_prev = m_sc[...]                                       # (1, 1)
    m_new = jnp.maximum(m_prev, jnp.max(logits, axis=-1))    # (1, 1)
    alpha = jnp.exp(m_prev - m_new)                          # (1, 1)

    e = jnp.where(valid, jnp.exp(logits - m_new[:, :, None]), 0.0)   # (1, 1, T)
    l_sc[...] = alpha * l_sc[...] + jnp.sum(e, axis=-1)              # (1, 1)

    # Select-masked product keeps NaN/Inf garbage in pad lanes out of the sum.
    prod = jnp.where(valid, x * e, 0.0)                              # (1, C, T)
    ctx_sc[...] = alpha * ctx_sc[...] + jnp.sum(prod, axis=-1)       # (1, C)
    m_sc[...] = m_new

    @pl.when(j == pl.num_programs(1) - 1)
    def _():
        ctx = ctx_sc[...] / l_sc[...]                                # (1, C)
        h = jnp.dot(ctx, w1t_ref[...], preferred_element_type=jnp.float32)
        h = jnp.where(h > 0, h, 0.2 * h)
        add = jnp.dot(h, w2t_ref[...], preferred_element_type=jnp.float32)
        add_ref[...] = add[:, None, :]                               # (1, 1, C)


def _gca_residual_kernel(x_ref, add_ref, o_ref):
    """Second HW-tiled sweep: out = x + add (broadcast over HW)."""
    xf = x_ref[...].astype(jnp.float32)                      # (1, C, T)
    add = add_ref[...][:, 0, :]                              # (1, C)
    o_ref[...] = (xf + add[:, :, None]).astype(o_ref.dtype)


# --------------------------------------------------------------------------
# Hardware-aware sizing helpers
# --------------------------------------------------------------------------
def _vmem_budget_bytes():
    """~85% of the per-TensorCore VMEM capacity (54 MiB v7x, ~110 MiB v5e/v6e)."""
    try:
        cap = getattr(pltpu.get_tpu_info(), "vmem_capacity_bytes", None)
        if cap:
            return int(cap * 0.85)
    except Exception:
        pass
    return 48 << 20   # conservative fallback that fits v7x's 64 MiB per-TC VMEM


def _num_tensorcores():
    """Best-effort TensorCores-per-chip (v7x = 2, v5e/v6e = 1)."""
    try:
        dev = jax.local_devices()[0]
        for attr in ("num_cores", "core_count"):
            v = getattr(dev, attr, None)
            if isinstance(v, int) and v > 0:
                return v
    except Exception:
        pass
    # Unknown: assume 2 so a v7x TensorCore is never left idle; the cost on a
    # single-TC chip is one extra ~0.35 us grid step (negligible).
    return 2


def _pick_block_b(B, bytes_per_batch, *, target_bytes, slab_cap_bytes, num_cores):
    """Pack batches per grid step: ~4 MiB blocks, VMEM-capped, core-aware."""
    bb = max(1, min(B, slab_cap_bytes // max(bytes_per_batch, 1)))
    bb = min(bb, max(1, target_bytes // max(bytes_per_batch, 1)))
    if num_cores > 1 and B >= num_cores:
        bb = min(bb, max(1, B // num_cores))   # keep every TensorCore busy
    while B % bb:                              # no ragged last batch block
        bb -= 1
    return bb


# --------------------------------------------------------------------------
# Wrapper
# --------------------------------------------------------------------------
def _gca_forward_impl(x_nchw, w_mask, w1, w2, _force_hw_tile=None):
    """x_nchw: (B, C, H, W); w_mask: (1, C); w1: (P, C); w2: (C, P)."""
    B, C, H, W = x_nchw.shape
    HW = H * W
    P = w1.shape[0]
    out_dtype = x_nchw.dtype

    x3 = x_nchw.reshape(B, C, HW)              # free row-major reshape, no pad
    wm = w_mask.astype(jnp.float32)            # (1, C)
    # Pre-transpose 1x1-conv weights so in-kernel dots are plain (M,K)@(K,N).
    w1t = w1.astype(jnp.float32).T             # (C, P)
    w2t = w2.astype(jnp.float32).T             # (P, C)

    budget = _vmem_budget_bytes()
    num_cores = _num_tensorcores()
    target_bytes = 4 << 20
    slab_cap = max(budget // 8, 1 << 20)
    bytes_f32 = C * HW * 4                     # f32 working bytes per batch

    if _force_hw_tile is None and bytes_f32 <= slab_cap:
        # -------- fused single-kernel path (whole HW per block) ------------
        bb = _pick_block_b(B, bytes_f32, target_bytes=target_bytes,
                           slab_cap_bytes=slab_cap, num_cores=num_cores)
        slab_io = bb * C * HW * x3.dtype.itemsize
        slab_f32 = bb * bytes_f32
        vmem_limit = int(min(budget,
                             max(4 * slab_io + 3 * slab_f32 + (2 << 20), 16 << 20)))

        out = pl.pallas_call(
            _gca_fused_kernel,
            out_shape=jax.ShapeDtypeStruct((B, C, HW), out_dtype),
            grid_spec=pltpu.PrefetchScalarGridSpec(
                num_scalar_prefetch=0,
                grid=(B // bb,),
                in_specs=[
                    pl.BlockSpec((bb, C, HW), lambda i: (i, 0, 0)),
                    pl.BlockSpec((1, C), lambda i: (0, 0)),
                    pl.BlockSpec((C, P), lambda i: (0, 0)),
                    pl.BlockSpec((P, C), lambda i: (0, 0)),
                ],
                out_specs=pl.BlockSpec((bb, C, HW), lambda i: (i, 0, 0)),
            ),
            compiler_params=pltpu.CompilerParams(
                dimension_semantics=("parallel",),
                vmem_limit_bytes=vmem_limit,
            ),
        )(x3, wm, w1t, w2t)
        return out.reshape(B, C, H, W)

    # -------- HW-tiled fallback for large per-batch slabs -------------------
    if _force_hw_tile is not None:
        hw_tile = int(_force_hw_tile)
    else:
        hw_tile = max(128, (max(1, target_bytes // (C * 4)) // 128) * 128)
        hw_tile = min(hw_tile, ((HW + 127) // 128) * 128)
    n_hw = pl.cdiv(HW, hw_tile)

    tile_io = C * hw_tile * x3.dtype.itemsize
    tile_f32 = C * hw_tile * 4
    vmem_limit = int(min(budget,
                         max(4 * tile_io + 3 * tile_f32 + (2 << 20), 16 << 20)))

    # Pass 1: HW-tiled online-softmax reduction -> per-batch "add" vector.
    add = pl.pallas_call(
        functools.partial(_gca_ctx_tiled_kernel, hw_total=HW, hw_tile=hw_tile),
        out_shape=jax.ShapeDtypeStruct((B, 1, C), jnp.float32),
        grid_spec=pltpu.PrefetchScalarGridSpec(
            num_scalar_prefetch=0,
            grid=(B, n_hw),
            in_specs=[
                pl.BlockSpec((1, C, hw_tile), lambda i, j: (i, 0, j)),
                pl.BlockSpec((1, C), lambda i, j: (0, 0)),
                pl.BlockSpec((C, P), lambda i, j: (0, 0)),
                pl.BlockSpec((P, C), lambda i, j: (0, 0)),
            ],
            out_specs=pl.BlockSpec((1, 1, C), lambda i, j: (i, 0, 0)),
            scratch_shapes=[
                pltpu.VMEM((1, 1), jnp.float32),   # running max
                pltpu.VMEM((1, 1), jnp.float32),   # running sum_e
                pltpu.VMEM((1, C), jnp.float32),   # running unnormalized ctx
            ],
        ),
        compiler_params=pltpu.CompilerParams(
            dimension_semantics=("parallel", "arbitrary"),
            vmem_limit_bytes=vmem_limit,
        ),
    )(x3, wm, w1t, w2t)

    # Pass 2: HW-tiled broadcast residual add.
    out = pl.pallas_call(
        _gca_residual_kernel,
        out_shape=jax.ShapeDtypeStruct((B, C, HW), out_dtype),
        grid_spec=pltpu.PrefetchScalarGridSpec(
            num_scalar_prefetch=0,
            grid=(B, n_hw),
            in_specs=[
                pl.BlockSpec((1, C, hw_tile), lambda i, j: (i, 0, j)),
                pl.BlockSpec((1, 1, C), lambda i, j: (i, 0, 0)),
            ],
            out_specs=pl.BlockSpec((1, C, hw_tile), lambda i, j: (i, 0, j)),
        ),
        compiler_params=pltpu.CompilerParams(
            dimension_semantics=("parallel", "parallel"),
            vmem_limit_bytes=vmem_limit,
        ),
    )(x3, add)
    return out.reshape(B, C, H, W)


gca_forward = jax.jit(_gca_forward_impl)
# Forces the HW-tiled large-slab path with a tiny tile (for testing coverage).
_gca_forward_tiled = jax.jit(functools.partial(_gca_forward_impl, _force_hw_tile=128))


def gca_reference(x_nchw, w_mask, w1, w2):
    """Pure-JAX reference mirroring the PyTorch module."""
    B, C, H, W = x_nchw.shape
    x = x_nchw.reshape(B, C, H * W).astype(jnp.float32)
    logits = jnp.einsum("oc,bch->bh", w_mask, x)          # (B, HW)
    p = jax.nn.softmax(logits, axis=-1)                   # (B, HW)
    ctx = jnp.einsum("bch,bh->bc", x, p)                  # (B, C)
    h = jnp.einsum("pc,bc->bp", w1, ctx)
    h = jnp.where(h > 0, h, 0.2 * h)
    add = jnp.einsum("cp,bp->bc", w2, h)                  # (B, C)
    return x_nchw.astype(jnp.float32) + add[:, :, None, None]


if __name__ == "__main__":
    key = jax.random.PRNGKey(0)
    k_x, k_wm, k_w1, k_w2 = jax.random.split(key, 4)

    B, C, H, W = 2, 4, 16, 16        # inplanes = 4
    P = 8                            # planes   = 8

    x = jax.random.normal(k_x, (B, C, H, W), dtype=jnp.float32)
    # Conv2d(inplanes, 1, 1, bias=False)   -> weight (1, C, 1, 1) -> (1, C)
    w_mask = jax.random.normal(k_wm, (1, C), dtype=jnp.float32) * 0.1
    # Conv2d(inplanes, planes, 1, bias=False) -> (P, C)
    w1 = jax.random.normal(k_w1, (P, C), dtype=jnp.float32) * 0.1
    # Conv2d(planes, inplanes, 1, bias=False) -> (C, P)
    w2 = jax.random.normal(k_w2, (C, P), dtype=jnp.float32) * 0.1

    # Fused path, HW multiple of 128.
    out = gca_forward(x, w_mask, w1, w2)
    jax.block_until_ready(out)
    ref = gca_reference(x, w_mask, w1, w2)
    if not jnp.allclose(out, ref, atol=1e-5, rtol=1e-5):
        raise AssertionError("Pallas GCA fused kernel does not match reference")

    # Fused path, non-128-multiple HW (un-padded ragged lane tail).
    x2 = jax.random.normal(k_x, (4, C, 7, 7), dtype=jnp.float32)
    out2 = gca_forward(x2, w_mask, w1, w2)
    jax.block_until_ready(out2)
    if not jnp.allclose(out2, gca_reference(x2, w_mask, w1, w2),
                        atol=1e-5, rtol=1e-5):
        raise AssertionError("Pallas GCA fused kernel (ragged HW) mismatch")

    # bf16 I/O path (math stays f32 in-kernel).
    xb = x.astype(jnp.bfloat16)
    outb = gca_forward(xb, w_mask, w1, w2)
    jax.block_until_ready(outb)
    refb = gca_reference(xb.astype(jnp.float32), w_mask, w1, w2)
    if not jnp.allclose(outb.astype(jnp.float32), refb, atol=3e-2, rtol=3e-2):
        raise AssertionError("Pallas GCA bf16 path mismatch")

    # HW-tiled large-slab fallback (forced small tile): exact multiple tiles.
    out_t = _gca_forward_tiled(x, w_mask, w1, w2)
    jax.block_until_ready(out_t)
    if not jnp.allclose(out_t, ref, atol=1e-5, rtol=1e-5):
        raise AssertionError("Pallas GCA HW-tiled path mismatch")

    # HW-tiled fallback with a ragged last tile (HW = 130, tile = 128).
    x_r = jax.random.normal(k_x, (2, C, 10, 13), dtype=jnp.float32)
    out_t2 = _gca_forward_tiled(x_r, w_mask, w1, w2)
    jax.block_until_ready(out_t2)
    if not jnp.allclose(out_t2, gca_reference(x_r, w_mask, w1, w2),
                        atol=1e-5, rtol=1e-5):
        raise AssertionError("Pallas GCA HW-tiled path (ragged tile) mismatch")

    print("KERNEL_OK")
</pallas_src>

<mosaic_0001>
module attributes {stable_mosaic.version = 11 : i64} {
  func.func @_gca_fused_kernel(%arg0: i32, %arg1: memref<1x4x256xf32, #tpu.memory_space<vmem>>, %arg2: memref<1x4xf32, #tpu.memory_space<vmem>>, %arg3: memref<4x8xf32, #tpu.memory_space<vmem>>, %arg4: memref<8x4xf32, #tpu.memory_space<vmem>>, %arg5: memref<1x4x256xf32, #tpu.memory_space<vmem>>) attributes {dimension_semantics = [#tpu.dimension_semantics<parallel>], iteration_bounds = array<i64: 2>, scalar_prefetch = 0 : i64, scratch_operands = 0 : i64, tpu.core_type = #tpu.core_type<tc>, window_params = [{transform_indices = @transform_0, window_bounds = array<i64: 1, 4, 256>}, {pipeline_mode = #tpu.pipeline_mode<synchronous>, transform_indices = @transform_1, window_bounds = array<i64: 1, 4>}, {pipeline_mode = #tpu.pipeline_mode<synchronous>, transform_indices = @transform_2, window_bounds = array<i64: 4, 8>}, {pipeline_mode = #tpu.pipeline_mode<synchronous>, transform_indices = @transform_3, window_bounds = array<i64: 8, 4>}, {transform_indices = @transform_4, window_bounds = array<i64: 1, 4, 256>}]} {
    %c0 = arith.constant 0 : index
    %c0_0 = arith.constant 0 : index
    %c0_1 = arith.constant 0 : index
    %0 = vector.load %arg1[%c0, %c0_0, %c0_1] : memref<1x4x256xf32, #tpu.memory_space<vmem>>, vector<1x4x256xf32>
    %c0_2 = arith.constant 0 : index
    %c0_3 = arith.constant 0 : index
    %1 = vector.load %arg2[%c0_2, %c0_3] : memref<1x4xf32, #tpu.memory_space<vmem>>, vector<1x4xf32>
    %2 = vector.shape_cast %1 : vector<1x4xf32> to vector<1x1x4xf32>
    "tpu.trace_start"() <{level = 10 : i32, message = "boc,bch->boh"}> : () -> ()
    %cst = arith.constant dense<0.000000e+00> : vector<1x1x256xf32>
    %3 = tpu.matmul %2, %0, %cst {dimension_numbers = #tpu.dot_dimension_numbers<[2], [1], [1], [2], [0, 0, 0, 1, 1, 2], [0], [0]>} : vector<1x1x4xf32>, vector<1x4x256xf32>, vector<1x1x256xf32> -> vector<1x1x256xf32>
    "tpu.trace_stop"() : () -> ()
    %cst_4 = arith.constant dense<0xFF800000> : vector<1x1xf32>
    %4 = vector.multi_reduction <maximumf>, %3, %cst_4 [2] : vector<1x1x256xf32> to vector<1x1xf32>
    %5 = vector.shape_cast %4 : vector<1x1xf32> to vector<1x1x1xf32>
    %6 = vector.broadcast %5 : vector<1x1x1xf32> to vector<1x1x256xf32>
    %7 = arith.subf %3, %6 : vector<1x1x256xf32>
    %8 = math.exp %7 : vector<1x1x256xf32>
    %cst_5 = arith.constant dense<0.000000e+00> : vector<1x1xf32>
    %9 = vector.multi_reduction <add>, %8, %cst_5 [2] : vector<1x1x256xf32> to vector<1x1xf32>
    %10 = vector.shape_cast %9 : vector<1x1xf32> to vector<1x1x1xf32>
    %11 = vector.broadcast %8 : vector<1x1x256xf32> to vector<1x4x256xf32>
    %12 = arith.mulf %0, %11 : vector<1x4x256xf32>
    %cst_6 = arith.constant dense<0.000000e+00> : vector<1x4xf32>
    %13 = vector.multi_reduction <add>, %12, %cst_6 [2] : vector<1x4x256xf32> to vector<1x4xf32>
    %14 = vector.shape_cast %10 : vector<1x1x1xf32> to vector<1x1xf32>
    %15 = vector.broadcast %14 : vector<1x1xf32> to vector<1x4xf32>
    %16 = arith.divf %13, %15 : vector<1x4xf32>
    %c0_7 = arith.constant 0 : index
    %c0_8 = arith.constant 0 : index
    %17 = vector.load %arg3[%c0_7, %c0_8] : memref<4x8xf32, #tpu.memory_space<vmem>>, vector<4x8xf32>
    %cst_9 = arith.constant dense<0.000000e+00> : vector<1x8xf32>
    %18 = tpu.matmul %16, %17, %cst_9 {dimension_numbers = #tpu.dot_dimension_numbers<[1], [0], [0], [1], [0, 0, 1, 1], [], []>} : vector<1x4xf32>, vector<4x8xf32>, vector<1x8xf32> -> vector<1x8xf32>
    %cst_10 = arith.constant 0.000000e+00 : f32
    %19 = vector.broadcast %cst_10 : f32 to vector<1x8xf32>
    %20 = arith.cmpf ogt, %18, %19 : vector<1x8xf32>
    %cst_11 = arith.constant 2.000000e-01 : f32
    %21 = vector.broadcast %cst_11 : f32 to vector<1x8xf32>
    %22 = arith.mulf %21, %18 : vector<1x8xf32>
    %23 = arith.select %20, %18, %22 : vector<1x8xi1>, vector<1x8xf32>
    %c0_12 = arith.constant 0 : index
    %c0_13 = arith.constant 0 : index
    %24 = vector.load %arg4[%c0_12, %c0_13] : memref<8x4xf32, #tpu.memory_space<vmem>>, vector<8x4xf32>
    %cst_14 = arith.constant dense<0.000000e+00> : vector<1x4xf32>
    %25 = tpu.matmul %23, %24, %cst_14 {dimension_numbers = #tpu.dot_dimension_numbers<[1], [0], [0], [1], [0, 0, 1, 1], [], []>} : vector<1x8xf32>, vector<8x4xf32>, vector<1x4xf32> -> vector<1x4xf32>
    %26 = vector.shape_cast %25 : vector<1x4xf32> to vector<1x4x1xf32>
    %27 = vector.broadcast %26 : vector<1x4x1xf32> to vector<1x4x256xf32>
    %28 = arith.addf %0, %27 : vector<1x4x256xf32>
    %c0_15 = arith.constant 0 : index
    %c0_16 = arith.constant 0 : index
    %c0_17 = arith.constant 0 : index
    %29 = vector.load %arg5[%c0_15, %c0_16, %c0_17] : memref<1x4x256xf32, #tpu.memory_space<vmem>>, vector<1x4x256xf32>
    tpu.vector_store %arg5[%c0_15, %c0_16, %c0_17], %28 {strides = array<i32>} : memref<1x4x256xf32, #tpu.memory_space<vmem>>, vector<1x4x256xf32>,
    return
  }
  func.func @transform_0(%arg0: i32) -> (i32, i32, i32) {
    %c0_i32 = arith.constant 0 : i32
    %c0_i32_0 = arith.constant 0 : i32
    %c0_i32_1 = arith.constant 0 : i32
    return %arg0, %c0_i32, %c0_i32_0 : i32, i32, i32
  }
  func.func @transform_1(%arg0: i32) -> (i32, i32) {
    %c0_i32 = arith.constant 0 : i32
    %c0_i32_0 = arith.constant 0 : i32
    %c0_i32_1 = arith.constant 0 : i32
    return %c0_i32, %c0_i32_0 : i32, i32
  }
  func.func @transform_2(%arg0: i32) -> (i32, i32) {
    %c0_i32 = arith.constant 0 : i32
    %c0_i32_0 = arith.constant 0 : i32
    %c0_i32_1 = arith.constant 0 : i32
    return %c0_i32, %c0_i32_0 : i32, i32
  }
  func.func @transform_3(%arg0: i32) -> (i32, i32) {
    %c0_i32 = arith.constant 0 : i32
    %c0_i32_0 = arith.constant 0 : i32
    %c0_i32_1 = arith.constant 0 : i32
    return %c0_i32, %c0_i32_0 : i32, i32
  }
  func.func @transform_4(%arg0: i32) -> (i32, i32, i32) {
    %c0_i32 = arith.constant 0 : i32
    %c0_i32_0 = arith.constant 0 : i32
    %c0_i32_1 = arith.constant 0 : i32
    return %arg0, %c0_i32, %c0_i32_0 : i32, i32, i32
  }
}

</mosaic_0001>

<llo_original>
// kernel: _gca_forward_impl.1
$region0: #{_gca_forward_impl.1}
  #allocation0 [shape = 'u32[]', space=smem, size = 0x4, offset = 0x4, fixed_abs, tag = 'smem constant byte address 0x4 - core index']
  #allocation1 [shape = 'u32[144,128]{1,0:T(1,128)}', space=vmem, size = 0x12000, scoped, tag = 'internal scratch']
  %s0 = inlined_call_operand.vmem [shape: f32[2,4,256], index: 0, kind: input, shape index: {}]
  %s1 = inlined_call_operand.vmem [shape: f32[1,4], index: 1, kind: input, shape index: {}]
  %s2 = inlined_call_operand.vmem [shape: f32[4,8], index: 2, kind: input, shape index: {}]
  %s3 = inlined_call_operand.vmem [shape: f32[8,4], index: 3, kind: input, shape index: {}]
  %s4 = inlined_call_operand.vmem [shape: f32[2,4,256], index: 4, kind: output, shape index: {}]
  %s5 = sld [smem:[#allocation0]]
  $region49: #{_gca_forward_impl.1} parent=0
    _
  %s7 = ssub.s32 1, %s5
  %s8 = scalar_select 0, %s7, %s5
  loop: start=0, step=1, limit=4
  $region2: #{_gca_forward_impl.1} parent=0 // loop_pre_header
    _
  $region3: #{_gca_forward_impl.1} parent=0 // loop_header
    %s10 = sphi 0, %s14
    %p11 = scmp.ge.s32.totalorder %s10, 4
    %s20 = sphi 0, %s22
    %s23 = sphi 0, %s20
    %s24 = sphi 0, %s23
    %s40 = sphi 0, %s24
    %s44 = sphi 0, %s44
    %s46 = sphi 0, %s44
    %s47 = sphi 0, %s46
    %s61 = sphi 0, %s47
    %s65 = sphi 0, %s65
    %s67 = sphi 0, %s65
    %s68 = sphi 0, %s67
    %s82 = sphi 0, %s68
    %s86 = sphi 0, %s86
    %s88 = sphi 0, %s86
    %s89 = sphi 0, %s88
    %s103 = sphi 0, %s89
    %s109 = sphi 0, %s111
    %s112 = sphi 0, %s109
    %s113 = sphi 0, %s112
    %s129 = sphi 0, %s113
  $region4: #{_gca_forward_impl.1} parent=0 // loop_header_branch
    %13 = sbr.rel (%p11) target = $region8
  $region5: #{_gca_forward_impl.1} parent=0 // loop_body
    %s15 = ssub.s32 %s10, 1
    %s16 = ssub.s32 %s10, 2
    %s17 = sadd.s32 %s10, 1
    %s18 = ssub.s32 %s10, %s17
    %p19 = scmp.eq.s32.totalorder %s18, 0
    %s21 = sadd.s32 %s20, 1
    %s22 = scalar_select %p19, %s20, %s21
    %p25 = pneg %p19
    %p26 = scmp.eq.s32.totalorder %s10, 1
    %p27 = por %p25, %p26
    %p28 = scmp.ne.s32.totalorder %s20, %s23
    %p29 = scmp.eq.s32.totalorder %s10, 0
    %p30 = por %p28, %p29
    %p31 = scmp.ne.s32.totalorder %s20, %s23
    %p32 = scmp.eq.s32.totalorder %s15, 1
    %p33 = por %p31, %p32
    %p34 = scmp.ne.s32.totalorder %s23, %s24
    %p35 = scmp.eq.s32.totalorder %s15, 0
    %p36 = por %p34, %p35
    %p37 = scmp.ne.s32.totalorder %s23, %s24
    %p38 = scmp.eq.s32.totalorder %s16, 1
    %p39 = por %p37, %p38
    %p41 = scmp.ne.s32.totalorder %s24, %s40
    %p42 = scmp.eq.s32.totalorder %s16, 0
    %p43 = por %p41, %p42
    %s45 = sadd.s32 %s44, 1
    %p48 = scmp.eq.s32.totalorder %s10, 1
    %p49 = scmp.ne.s32.totalorder %s44, %s46
    %p50 = scmp.eq.s32.totalorder %s10, 0
    %p51 = por %p49, %p50
    %p52 = scmp.ne.s32.totalorder %s44, %s46
    %p53 = scmp.eq.s32.totalorder %s15, 1
    %p54 = por %p52, %p53
    %p55 = scmp.ne.s32.totalorder %s46, %s47
    %p56 = scmp.eq.s32.totalorder %s15, 0
    %p57 = por %p55, %p56
    %p58 = scmp.ne.s32.totalorder %s46, %s47
    %p59 = scmp.eq.s32.totalorder %s16, 1
    %p60 = por %p58, %p59
    %p62 = scmp.ne.s32.totalorder %s47, %s61
    %p63 = scmp.eq.s32.totalorder %s16, 0
    %p64 = por %p62, %p63
    %s66 = sadd.s32 %s65, 1
    %p69 = scmp.eq.s32.totalorder %s10, 1
    %p70 = scmp.ne.s32.totalorder %s65, %s67
    %p71 = scmp.eq.s32.totalorder %s10, 0
    %p72 = por %p70, %p71
    %p73 = scmp.ne.s32.totalorder %s65, %s67
    %p74 = scmp.eq.s32.totalorder %s15, 1
    %p75 = por %p73, %p74
    %p76 = scmp.ne.s32.totalorder %s67, %s68
    %p77 = scmp.eq.s32.totalorder %s15, 0
    %p78 = por %p76, %p77
    %p79 = scmp.ne.s32.totalorder %s67, %s68
    %p80 = scmp.eq.s32.totalorder %s16, 1
    %p81 = por %p79, %p80
    %p83 = scmp.ne.s32.totalorder %s68, %s82
    %p84 = scmp.eq.s32.totalorder %s16, 0
    %p85 = por %p83, %p84
    %s87 = sadd.s32 %s86, 1
    %p90 = scmp.eq.s32.totalorder %s10, 1
    %p91 = scmp.ne.s32.totalorder %s86, %s88
    %p92 = scmp.eq.s32.totalorder %s10, 0
    %p93 = por %p91, %p92
    %p94 = scmp.ne.s32.totalorder %s86, %s88
    %p95 = scmp.eq.s32.totalorder %s15, 1
    %p96 = por %p94, %p95
    %p97 = scmp.ne.s32.totalorder %s88, %s89
    %p98 = scmp.eq.s32.totalorder %s15, 0
    %p99 = por %p97, %p98
    %p100 = scmp.ne.s32.totalorder %s88, %s89
    %p101 = scmp.eq.s32.totalorder %s16, 1
    %p102 = por %p100, %p101
    %p104 = scmp.ne.s32.totalorder %s89, %s103
    %p105 = scmp.eq.s32.totalorder %s16, 0
    %p106 = por %p104, %p105
    %s107 = ssub.s32 %s10, %s17
    %p108 = scmp.eq.s32.totalorder %s107, 0
    %s110 = sadd.s32 %s109, 1
    %s111 = scalar_select %p108, %s109, %s110
    %p114 = pneg %p108
    %p115 = scmp.eq.s32.totalorder %s10, 1
    %p116 = por %p114, %p115
    %p117 = scmp.ne.s32.totalorder %s109, %s112
    %p118 = scmp.eq.s32.totalorder %s10, 0
    %p119 = por %p117, %p118
    %p120 = scmp.ne.s32.totalorder %s109, %s112
    %p121 = scmp.eq.s32.totalorder %s15, 1
    %p122 = por %p120, %p121
    %p123 = scmp.ne.s32.totalorder %s112, %s113
    %p124 = scmp.eq.s32.totalorder %s15, 0
    %p125 = por %p123, %p124
    %p126 = scmp.ne.s32.totalorder %s112, %s113
    %p127 = scmp.eq.s32.totalorder %s16, 1
    %p128 = por %p126, %p127
    %p130 = scmp.ne.s32.totalorder %s113, %s129
    %p131 = scmp.eq.s32.totalorder %s16, 0
    %p132 = por %p130, %p131
    %p133 = scmp.le.s32.totalorder 1, %s10
    %p134 = scmp.lt.s32.totalorder %s10, 3
    %p135 = pnand %p133, %p134
    %p136 = pneg %p135
    // Predicated region
    $region9: #{_gca_forward_impl.1} parent=5 // pred_check
      _
    $region10: #{_gca_forward_impl.1} parent=5 // pred_check_branch
      %138 = sbr.rel (%p135) target = $region12
    $region11: #{_gca_forward_impl.1} parent=5 // pred_region
      %s139 = ssub.s32 %s10, 1
      // Predicated region
      $region13: #{_gca_forward_impl.1} parent=11 // pred_check
        %p140 = pneg %p57
      $region14: #{_gca_forward_impl.1} parent=11 // pred_check_branch
        %142 = sbr.rel (%p140) target = $region16
      $region15: #{_gca_forward_impl.1} parent=11 // pred_region
        _
      $region16: #{_gca_forward_impl.1} parent=11 // pred_fallthru
        _
      // Predicated region
      $region17: #{_gca_forward_impl.1} parent=11 // pred_check
        %p143 = pneg %p78
      $region18: #{_gca_forward_impl.1} parent=11 // pred_check_branch
        %145 = sbr.rel (%p143) target = $region20
      $region19: #{_gca_forward_impl.1} parent=11 // pred_region
        _
      $region20: #{_gca_forward_impl.1} parent=11 // pred_fallthru
        _
      // Predicated region
      $region21: #{_gca_forward_impl.1} parent=11 // pred_check
        %p146 = pneg %p99
      $region22: #{_gca_forward_impl.1} parent=11 // pred_check_branch
        %148 = sbr.rel (%p146) target = $region24
      $region23: #{_gca_forward_impl.1} parent=11 // pred_region
        _
      $region24: #{_gca_forward_impl.1} parent=11 // pred_fallthru
        _
    $region12: #{_gca_forward_impl.1} parent=5 // pred_fallthru
      _
    %p149 = scmp.lt.s32.totalorder %s10, 2
    // Predicated region
    $region25: #{_gca_forward_impl.1} parent=5 // pred_check
      %p150 = pneg %p149
    $region26: #{_gca_forward_impl.1} parent=5 // pred_check_branch
      %152 = sbr.rel (%p150) target = $region28
    $region27: #{_gca_forward_impl.1} parent=5 // pred_region
      // Predicated region
      $region29: #{_gca_forward_impl.1} parent=27 // pred_check
        %p153 = pneg %p30
      $region30: #{_gca_forward_impl.1} parent=27 // pred_check_branch
        %155 = sbr.rel (%p153) target = $region32
      $region31: #{_gca_forward_impl.1} parent=27 // pred_region
        %p156 = scmp.lt.s32.totalorder %s10, 1
        %s157 = scalar_select %p156, %s10, 1
        %s158 = smul.addr %s157, 2
        %s159 = smul.addr %s158, 4
        %s160 = scalar_lea.vmem %s0, %s159
      $region32: #{_gca_forward_impl.1} parent=27 // pred_fallthru
        _
    $region28: #{_gca_forward_impl.1} parent=5 // pred_fallthru
      _
    %p161 = scmp.le.s32.totalorder 1, %s10
    %p162 = scmp.lt.s32.totalorder %s10, 3
    %p163 = pnand %p161, %p162
    %p164 = pneg %p163
    // Predicated region
    $region33: #{_gca_forward_impl.1} parent=5 // pred_check
      _
    $region34: #{_gca_forward_impl.1} parent=5 // pred_check_branch
      %166 = sbr.rel (%p163) target = $region36
    $region35: #{_gca_forward_impl.1} parent=5 // pred_region
      %s167 = ssub.s32 %s10, 1
      %p168 = scmp.lt.s32.totalorder %s15, 1
      %s169 = scalar_select %p168, %s15, 1
      %s170 = smul.addr %s169, 2
      %s171 = smul.addr %s170, 4
      %s172 = scalar_lea.vmem %s0, %s171
      %p173 = pneg %p36
      %p174 = pneg %p33
      %p175 = pneg %p57
      %p176 = pneg %p54
      %p177 = pneg %p78
      %p178 = pneg %p75
      %p179 = pneg %p99
      %p180 = pneg %p96
      %p181 = pneg %p125
      %p182 = pneg %p122
      %p183 = scmp.lt.s32.totalorder %s15, 1
      %s184 = scalar_select %p183, %s15, 1
      %s185 = smul.addr %s184, 2
      %s186 = smul.addr %s185, 4
      %s187 = scalar_lea.vmem %s4, %s186
      %p188 = scmp.lt.s32.totalorder %s15, 1
      %s189 = scalar_select %p188, %s15, 1
      %s190 = smul.addr %s189, 2
      %s191 = smul.addr %s190, 4
      %s192 = scalar_lea.vmem %s0, %s191
      %p193 = scmp.lt.s32.totalorder %s15, 1
      %s194 = scalar_select %p193, %s15, 1
      %s195 = smul.addr %s194, 2
      %s196 = smul.addr %s195, 4
      %s197 = scalar_lea.vmem %s4, %s196
      %v198 = vld [vmem:[%s192] sm:$0xff]
      %v199 = vld [vmem:[%s1] sm:$0x1]
      %v201 = vcombine.high %v198, %v198
      %vm202 = vcmask 31744
      %v204 = vsel %vm202, %v199, 0
      %vm206 = vcmask 1043456
      %v207 = vsel %vm206, %v198, 0
      %v209 = vsel %vm206, %v201, 0
      %211 = vmatprep.subr.mxu0 %v209
      %212 = vmatpush1.msra.mxu0 %v207
      %213 = vmatprep.subr.mxu0 0.0
      %214 = vmatpush1.msra.mxu0 0.0
      %215 = vmatprep.subr.mxu0 0.0
      %216 = vmatpush1.msra.mxu0 0.0
      %217 = vmatprep.subr.mxu0 0.0
      %218 = vmatpush1.msra.mxu0 0.0
      %219 = vmatprep.subr.mxu0 0.0
      %220 = vmatpush1.msra.mxu0 0.0
      %221 = vmatprep.subr.mxu0 0.0
      %222 = vmatpush1.msra.mxu0 0.0
      %223 = vmatprep.subr.mxu0 0.0
      %224 = vmatpush1.msra.mxu0 0.0
      %225 = vmatprep.subr.mxu0 0.0
      %226 = vmatpush1.msra.mxu0 0.0
      %227 = vmatprep.subr.mxu0 0.0
      %228 = vmatpush1.msra.mxu0 0.0
      %229 = vmatprep.subr.mxu0 0.0
      %230 = vmatpush1.msra.mxu0 0.0
      %231 = vmatprep.subr.mxu0 0.0
      %232 = vmatpush1.msra.mxu0 0.0
      %233 = vmatprep.subr.mxu0 0.0
      %234 = vmatpush1.msra.mxu0 0.0
      %235 = vmatprep.subr.mxu0 0.0
      %236 = vmatpush1.msra.mxu0 0.0
      %237 = vmatprep.subr.mxu0 0.0
      %238 = vmatpush1.msra.mxu0 0.0
      %239 = vmatprep.subr.mxu0 0.0
      %240 = vmatpush1.msra.mxu0 0.0
      %241 = vmatprep.subr.mxu0 0.0
      %242 = vmatpush1.msra.mxu0 0.0
      %243 = vmatprep.subr.mxu0 0.0
      %244 = vmatpush1.msra.mxu0 0.0
      %245 = vmatprep.subr.mxu0 0.0
      %246 = vmatpush1.msra.mxu0 0.0
      %247 = vmatprep.subr.mxu0 0.0
      %248 = vmatpush1.msra.mxu0 0.0
      %249 = vmatprep.subr.mxu0 0.0
      %250 = vmatpush1.msra.mxu0 0.0
      %251 = vmatprep.subr.mxu0 0.0
      %252 = vmatpush1.msra.mxu0 0.0
      %253 = vmatprep.subr.mxu0 0.0
      %254 = vmatpush1.msra.mxu0 0.0
      %255 = vmatprep.subr.mxu0 0.0
      %256 = vmatpush1.msra.mxu0 0.0
      %257 = vmatprep.subr.mxu0 0.0
      %258 = vmatpush1.msra.mxu0 0.0
      %259 = vmatprep.subr.mxu0 0.0
      %260 = vmatpush1.msra.mxu0 0.0
      %261 = vmatprep.subr.mxu0 0.0
      %262 = vmatpush1.msra.mxu0 0.0
      %263 = vmatprep.subr.mxu0 0.0
      %264 = vmatpush1.msra.mxu0 0.0
      %265 = vmatprep.subr.mxu0 0.0
      %266 = vmatpush1.msra.mxu0 0.0
      %267 = vmatprep.subr.mxu0 0.0
      %268 = vmatpush1.msra.mxu0 0.0
      %269 = vmatprep.subr.mxu0 0.0
      %270 = vmatpush1.msra.mxu0 0.0
      %271 = vmatprep.subr.mxu0 0.0
      %272 = vmatpush1.msra.mxu0 0.0
      %273 = vmatprep.subr.mxu0 0.0
      %274 = vmatpush1.msra.mxu0 0.0
      %275 = vmatprep.mubr.f32.mxu0 0.0
      %276 = vmatmul.mubr.f32.gmra.mrb[0].mxu0 %v204
      %v277 = vpop.f32.mrb[0].mxu0
      %v278 = vadd.f32 0.0, %v277
      %v279 = vpop.f32.mrb[0].mxu0
      %v280 = vadd.f32 0.0, %v279
      %281 = vdwg.mxu0
      %vm282 = vcmask 1040384
      %v283 = vsel %vm282, %v278, -inf
      %v284 = vsel %vm282, %v280, -inf
      %v285 = vmax.f32 %v283, %v284
      %286 = vmax.xlane.f32.xlu0 %v285
      %v287 = vpop.xlane.xlu0 %286
      %v288 = vsub.f32 %v278, %v287
      %v289 = vsub.f32 %v280, %v287
      %v290 = vmul.f32 %v288, 1.442695
      %v291 = vpow.pop %v290
      %v292 = vmul.f32 %v289, 1.442695
      %v293 = vpow.pop %v292
      %v294 = vsel %vm282, %v291, 0.0
      %v295 = vsel %vm282, %v293, 0.0
      %v296 = vadd.f32 %v294, %v295
      %297 = vadd.xlane.f32.xlu0 %v296
      %v298 = vpop.xlane.xlu0 %297
      %v299 = vlaneseq
      %v300 = vshrl.u32 %v299, 7
      %v301 = vsub.s32 0, %v300
      %v302 = vrot.slane %v291, %v301
      %v303 = vlaneseq
      %v304 = vshrl.u32 %v303, 7
      %v305 = vsub.s32 0, %v304
      %v306 = vrot.slane %v293, %v305
      %v309 = vcombine.low %v302, %v306
      %v311 = vmul.f32 %v198, %v309
      %v313 = vcombine.high %v311, %v311
      %v315 = vsel %vm206, %v311, 0.0
      %v316 = vsel %vm206, %v313, 0.0
      %v317 = vadd.f32 %v315, %v316
      %318 = vadd.xlane.f32.xlu0 %v317
      %v319 = vpop.xlane.xlu0 %318
      %v321 = vlaneseq
      %v322 = vshrl.u32 %v321, 7
      %v323 = vsub.s32 0, %v322
      %v324 = vrot.slane %v298, %v323
      %v326 = vrcp.pop %v324
      %v327 = vmul.f32 %v319, %v326
      %v328 = vld [vmem:[%s2] sm:$0xf]
      %330 = vset.pattern.permute.xlu0 0
      %331 = vperm.xlu0 %330, %v327
      %v332 = vpop.permute.xlu0 %331
      %v333 = vlaneseq
      %v334 = vand.u32 %v333, 127
      %v335 = vlaneseq
      %v336 = vshrl.u32 %v335, 7
      %v337 = vsub.s32 %v334, %v336
      %v338 = vrot.slane %v332, %v337
      %v339 = vsel %vm202, %v338, 0
      %v342 = vsel %vm206, %v328, 0
      %344 = vmatprep.subr.mxu0 0.0
      %345 = vmatpush1.msra.mxu0 %v342
      %346 = vmatprep.subr.mxu0 0.0
      %347 = vmatpush1.msra.mxu0 0.0
      %348 = vmatprep.subr.mxu0 0.0
      %349 = vmatpush1.msra.mxu0 0.0
      %350 = vmatprep.subr.mxu0 0.0
      %351 = vmatpush1.msra.mxu0 0.0
      %352 = vmatprep.subr.mxu0 0.0
      %353 = vmatpush1.msra.mxu0 0.0
      %354 = vmatprep.subr.mxu0 0.0
      %355 = vmatpush1.msra.mxu0 0.0
      %356 = vmatprep.subr.mxu0 0.0
      %357 = vmatpush1.msra.mxu0 0.0
      %358 = vmatprep.subr.mxu0 0.0
      %359 = vmatpush1.msra.mxu0 0.0
      %360 = vmatprep.subr.mxu0 0.0
      %361 = vmatpush1.msra.mxu0 0.0
      %362 = vmatprep.subr.mxu0 0.0
      %363 = vmatpush1.msra.mxu0 0.0
      %364 = vmatprep.subr.mxu0 0.0
      %365 = vmatpush1.msra.mxu0 0.0
      %366 = vmatprep.subr.mxu0 0.0
      %367 = vmatpush1.msra.mxu0 0.0
      %368 = vmatprep.subr.mxu0 0.0
      %369 = vmatpush1.msra.mxu0 0.0
      %370 = vmatprep.subr.mxu0 0.0
      %371 = vmatpush1.msra.mxu0 0.0
      %372 = vmatprep.subr.mxu0 0.0
      %373 = vmatpush1.msra.mxu0 0.0
      %374 = vmatprep.subr.mxu0 0.0
      %375 = vmatpush1.msra.mxu0 0.0
      %376 = vmatprep.subr.mxu0 0.0
      %377 = vmatpush1.msra.mxu0 0.0
      %378 = vmatprep.subr.mxu0 0.0
      %379 = vmatpush1.msra.mxu0 0.0
      %380 = vmatprep.subr.mxu0 0.0
      %381 = vmatpush1.msra.mxu0 0.0
      %382 = vmatprep.subr.mxu0 0.0
      %383 = vmatpush1.msra.mxu0 0.0
      %384 = vmatprep.subr.mxu0 0.0
      %385 = vmatpush1.msra.mxu0 0.0
      %386 = vmatprep.subr.mxu0 0.0
      %387 = vmatpush1.msra.mxu0 0.0
      %388 = vmatprep.subr.mxu0 0.0
      %389 = vmatpush1.msra.mxu0 0.0
      %390 = vmatprep.subr.mxu0 0.0
      %391 = vmatpush1.msra.mxu0 0.0
      %392 = vmatprep.subr.mxu0 0.0
      %393 = vmatpush1.msra.mxu0 0.0
      %394 = vmatprep.subr.mxu0 0.0
      %395 = vmatpush1.msra.mxu0 0.0
      %396 = vmatprep.subr.mxu0 0.0
      %397 = vmatpush1.msra.mxu0 0.0
      %398 = vmatprep.subr.mxu0 0.0
      %399 = vmatpush1.msra.mxu0 0.0
      %400 = vmatprep.subr.mxu0 0.0
      %401 = vmatpush1.msra.mxu0 0.0
      %402 = vmatprep.subr.mxu0 0.0
      %403 = vmatpush1.msra.mxu0 0.0
      %404 = vmatprep.subr.mxu0 0.0
      %405 = vmatpush1.msra.mxu0 0.0
      %406 = vmatprep.subr.mxu0 0.0
      %407 = vmatpush1.msra.mxu0 0.0
      %408 = vmatprep.mubr.f32.mxu0 0.0
      %409 = vmatmul.mubr.f32.gmra.mrb[0].mxu0 %v339
      %v410 = vpop.f32.mrb[0].mxu0
      %v411 = vadd.f32 0.0, %v410
      %v412 = vpop.f32.mrb[0].mxu0
      %413 = vdwg.mxu0
      %vm414 = vcmp.gt.f32.partialorder %v411, 0.0
      %v415 = vmul.f32 %v411, 0.2
      %v416 = vsel %vm414, %v411, %v415
      %v417 = vld [vmem:[%s3] sm:$0xff]
      %vm418 = vcmask 64512
      %v420 = vsel %vm418, %v416, 0
      %422 = vmatprep.subr.mxu0 0.0
      %423 = vmatpush1.msra.mxu0 %v417
      %424 = vmatprep.subr.mxu0 0.0
      %425 = vmatpush1.msra.mxu0 0.0
      %426 = vmatprep.subr.mxu0 0.0
      %427 = vmatpush1.msra.mxu0 0.0
      %428 = vmatprep.subr.mxu0 0.0
      %429 = vmatpush1.msra.mxu0 0.0
      %430 = vmatprep.subr.mxu0 0.0
      %431 = vmatpush1.msra.mxu0 0.0
      %432 = vmatprep.subr.mxu0 0.0
      %433 = vmatpush1.msra.mxu0 0.0
      %434 = vmatprep.subr.mxu0 0.0
      %435 = vmatpush1.msra.mxu0 0.0
      %436 = vmatprep.subr.mxu0 0.0
      %437 = vmatpush1.msra.mxu0 0.0
      %438 = vmatprep.subr.mxu0 0.0
      %439 = vmatpush1.msra.mxu0 0.0
      %440 = vmatprep.subr.mxu0 0.0
      %441 = vmatpush1.msra.mxu0 0.0
      %442 = vmatprep.subr.mxu0 0.0
      %443 = vmatpush1.msra.mxu0 0.0
      %444 = vmatprep.subr.mxu0 0.0
      %445 = vmatpush1.msra.mxu0 0.0
      %446 = vmatprep.subr.mxu0 0.0
      %447 = vmatpush1.msra.mxu0 0.0
      %448 = vmatprep.subr.mxu0 0.0
      %449 = vmatpush1.msra.mxu0 0.0
      %450 = vmatprep.subr.mxu0 0.0
      %451 = vmatpush1.msra.mxu0 0.0
      %452 = vmatprep.subr.mxu0 0.0
      %453 = vmatpush1.msra.mxu0 0.0
      %454 = vmatprep.subr.mxu0 0.0
      %455 = vmatpush1.msra.mxu0 0.0
      %456 = vmatprep.subr.mxu0 0.0
      %457 = vmatpush1.msra.mxu0 0.0
      %458 = vmatprep.subr.mxu0 0.0
      %459 = vmatpush1.msra.mxu0 0.0
      %460 = vmatprep.subr.mxu0 0.0
      %461 = vmatpush1.msra.mxu0 0.0
      %462 = vmatprep.subr.mxu0 0.0
      %463 = vmatpush1.msra.mxu0 0.0
      %464 = vmatprep.subr.mxu0 0.0
      %465 = vmatpush1.msra.mxu0 0.0
      %466 = vmatprep.subr.mxu0 0.0
      %467 = vmatpush1.msra.mxu0 0.0
      %468 = vmatprep.subr.mxu0 0.0
      %469 = vmatpush1.msra.mxu0 0.0
      %470 = vmatprep.subr.mxu0 0.0
      %471 = vmatpush1.msra.mxu0 0.0
      %472 = vmatprep.subr.mxu0 0.0
      %473 = vmatpush1.msra.mxu0 0.0
      %474 = vmatprep.subr.mxu0 0.0
      %475 = vmatpush1.msra.mxu0 0.0
      %476 = vmatprep.subr.mxu0 0.0
      %477 = vmatpush1.msra.mxu0 0.0
      %478 = vmatprep.subr.mxu0 0.0
      %479 = vmatpush1.msra.mxu0 0.0
      %480 = vmatprep.subr.mxu0 0.0
      %481 = vmatpush1.msra.mxu0 0.0
      %482 = vmatprep.subr.mxu0 0.0
      %483 = vmatpush1.msra.mxu0 0.0
      %484 = vmatprep.subr.mxu0 0.0
      %485 = vmatpush1.msra.mxu0 0.0
      %486 = vmatprep.mubr.f32.mxu0 0.0
      %487 = vmatmul.mubr.f32.gmra.mrb[0].mxu0 %v420
      %v488 = vpop.f32.mrb[0].mxu0
      %v489 = vadd.f32 0.0, %v488
      %v490 = vpop.f32.mrb[0].mxu0
      %491 = vdwg.mxu0
      %v492 = vlaneseq
      %v493 = vshrl.u32 %v492, 7
      %v494 = vsub.s32 0, %v493
      %v495 = vrot.slane %v489, %v494
      %497 = vbcast.lane.b32.xlu0 %v495, 256
      %v498 = vpop.permute.xlu0 %497
      %v501 = vunpack.c.l.s4 839922192
      %v502 = vunpack.c.0.s8 %v501
      %v503 = vlaneseq
      %v504 = vshrl.u32 %v503, 7
      %v505 = vsub.s32 %v502, %v504
      %v506 = vrot.slane %v498, %v505
      %v508 = vadd.f32 %v198, %v506
      %509 = vst [vmem:[%s197] sm:$0xff] %v508
      %p510 = scmp.lt.s32.totalorder %s15, 1
      %s511 = scalar_select %p510, %s15, 1
      %s512 = smul.addr %s511, 2
      %s513 = smul.addr %s512, 4
      %s514 = scalar_lea.vmem %s4, %s513
      // Predicated region
      $region37: #{_gca_forward_impl.1} parent=35 // pred_check
        %p515 = pneg %p122
      $region38: #{_gca_forward_impl.1} parent=35 // pred_check_branch
        %517 = sbr.rel (%p515) target = $region40
      $region39: #{_gca_forward_impl.1} parent=35 // pred_region
        _
      $region40: #{_gca_forward_impl.1} parent=35 // pred_fallthru
        _
    $region36: #{_gca_forward_impl.1} parent=5 // pred_fallthru
      _
    %p518 = scmp.le.s32.totalorder 2, %s10
    // Predicated region
    $region41: #{_gca_forward_impl.1} parent=5 // pred_check
      %p519 = pneg %p518
    $region42: #{_gca_forward_impl.1} parent=5 // pred_check_branch
      %521 = sbr.rel (%p519) target = $region44
    $region43: #{_gca_forward_impl.1} parent=5 // pred_region
      %s522 = ssub.s32 %s10, 2
      // Predicated region
      $region45: #{_gca_forward_impl.1} parent=43 // pred_check
        %p523 = pneg %p128
      $region46: #{_gca_forward_impl.1} parent=43 // pred_check_branch
        %525 = sbr.rel (%p523) target = $region48
      $region47: #{_gca_forward_impl.1} parent=43 // pred_region
        %p526 = scmp.lt.s32.totalorder %s16, 1
        %s527 = scalar_select %p526, %s16, 1
        %s528 = smul.addr %s527, 2
        %s529 = smul.addr %s528, 4
        %s530 = scalar_lea.vmem %s4, %s529
      $region48: #{_gca_forward_impl.1} parent=43 // pred_fallthru
        _
    $region44: #{_gca_forward_impl.1} parent=5 // pred_fallthru
      _
  $region6: #{_gca_forward_impl.1} parent=0 // loop_footer
    %s14 = sadd.s32 1, %s10
  $region7: #{_gca_forward_impl.1} parent=0 // loop_footer_branch
    %9 = sbr.rel target = $region3
  $region8: #{_gca_forward_impl.1} parent=0 // loop_exit
    _

</llo_original>
